<compile_context>
chip_gen: v7x
topology: tpu7x:2x2x1
jax: 0.10.0
libtpu: 0.0.40
codegen_flags: <defaults>
</compile_context>

<pallas_src>
import functools

import jax
import jax.numpy as jnp
from jax import lax
from jax.experimental import pallas as pl
from jax.experimental.pallas import tpu as pltpu

EPS = 1e-5  # nn.BatchNorm2d default eps


# ----------------------------- Pallas kernel ------------------------------ #
def _rep_block_kernel(act_ref, x_ref, w_ref, b_ref, o_ref, *,
                      K, W, pad, tile_m, hw_tiles):
    """One (image, Cout-tile, HW-tile) step of the merged rep-block conv.

    act_ref : (2,) f32 in SMEM        [lab2_scale / 6, lab2_bias]
    x_ref   : (Cin, L)       bf16     H-padded, row-major-flattened image
    w_ref   : (K*K, TCo, Cin) bf16    merged conv weight, one (TCo, Cin) per tap
    b_ref   : (TCo, 1)       f32      merged bias
    o_ref   : (TCo, TILE_M)           output tile (lanes = flattened H*W)
    """
    if hw_tiles == 1:
        t0 = 0                                             # fully static slices
    else:
        t0 = pl.multiple_of(pl.program_id(2) * tile_m, tile_m)

    tco = o_ref.shape[0]

    def window(off):
        if hw_tiles == 1:
            return x_ref[:, off:off + tile_m]              # static slice
        return x_ref[:, pl.ds(t0 + off, tile_m)]           # dynamic slice

    if K > 1:
        # original column index of every output lane (for W-boundary masking)
        col = (t0 + lax.broadcasted_iota(jnp.int32, (1, tile_m), 1)) % W

    y = jnp.zeros((tco, tile_m), jnp.float32)
    # All taps sharing a horizontal offset dk = kw - pad also share the same
    # row-wrap mask, so accumulate per kernel-column and mask once per kw.
    for kw in range(K):
        acc = jnp.zeros((tco, tile_m), jnp.float32)
        for kh in range(K):
            acc = acc + jnp.dot(w_ref[kh * K + kw], window(kh * W + kw),
                                preferred_element_type=jnp.float32)
        dk = kw - pad
        if dk < 0:    # tap reads left of the row start -> mask the row wrap
            acc = jnp.where(col >= -dk, acc, 0.0)
        elif dk > 0:  # tap reads right of the row end -> mask the row wrap
            acc = jnp.where(col < W - dk, acc, 0.0)
        y = y + acc

    y = y + b_ref[...]                             # f32 merged bias
    hsw = y * jnp.clip(y + 3.0, 0.0, 6.0)          # Hardswish*6 (the /6 folded in act_ref[0])
    o_ref[...] = (act_ref[0] * hsw + act_ref[1]).astype(o_ref.dtype)


# --------------------------- parameter handling ---------------------------- #
def init_params(key, in_ch, out_ch, kernel_size, num_conv_branches, stride=1):
    """Deterministic synthetic parameters matching the module's __init__ shapes."""
    ks = jax.random.split(key, 3 + 2 * num_conv_branches)

    def bn(k, c):
        k1, k2, k3, k4 = jax.random.split(k, 4)
        gamma = 1.0 + 0.1 * jax.random.normal(k1, (c,), jnp.float32)
        beta = 0.1 * jax.random.normal(k2, (c,), jnp.float32)
        mean = 0.1 * jax.random.normal(k3, (c,), jnp.float32)
        var = 1.0 + 0.1 * jnp.abs(jax.random.normal(k4, (c,), jnp.float32))
        return (gamma, beta, mean, var)

    has_identity = (in_ch == out_ch and stride == 1)
    has_1x1 = kernel_size > 1
    params = {
        "id_bn": bn(ks[0], in_ch) if has_identity else None,
        "w1": (0.1 * jax.random.normal(ks[1], (out_ch, in_ch, 1, 1), jnp.float32)
               if has_1x1 else None),
        "bn1": bn(ks[2], out_ch) if has_1x1 else None,
        "wk_list": [
            0.1 * jax.random.normal(
                ks[3 + 2 * i], (out_ch, in_ch, kernel_size, kernel_size),
                jnp.float32)
            for i in range(num_conv_branches)
        ],
        "bnk_list": [bn(ks[4 + 2 * i], out_ch) for i in range(num_conv_branches)],
        # LearnableAffineBlock defaults from __init__: scale=1.0, bias=0.0
        "lab1_s": jnp.float32(1.0), "lab1_b": jnp.float32(0.0),
        "lab2_s": jnp.float32(1.0), "lab2_b": jnp.float32(0.0),
    }
    return params


def _fold_bn(gamma, beta, mean, var):
    inv = gamma / jnp.sqrt(var + EPS)
    return inv, beta - mean * inv          # per-channel scale, bias


def merge_reparam(params, kernel_size, in_ch, out_ch):
    """Exactly merge identity-BN + 1x1-BN + all kxk-BN branches + first LAB
       into a single KxK conv weight (OIHW) and bias (inference-mode BN)."""
    K = kernel_size
    c = (K - 1) // 2
    w_eff = jnp.zeros((out_ch, in_ch, K, K), jnp.float32)
    b_eff = jnp.zeros((out_ch,), jnp.float32)

    if params.get("id_bn") is not None:
        assert in_ch == out_ch, "identity BN branch requires in_ch == out_ch"
        s, b = _fold_bn(*params["id_bn"])
        eye = jnp.eye(out_ch, in_ch, dtype=jnp.float32)
        w_eff = w_eff.at[:, :, c, c].add(eye * s[:, None])
        b_eff = b_eff + b

    if params.get("w1") is not None:
        s, b = _fold_bn(*params["bn1"])
        w_eff = w_eff.at[:, :, c, c].add(params["w1"][:, :, 0, 0] * s[:, None])
        b_eff = b_eff + b

    for wk, bnk in zip(params["wk_list"], params["bnk_list"]):
        s, b = _fold_bn(*bnk)
        w_eff = w_eff + wk * s[:, None, None, None]
        b_eff = b_eff + b

    # first LearnableAffineBlock: lab(out) = s1 * out + b1  (exact fold)
    w_eff = w_eff * params["lab1_s"]
    b_eff = b_eff * params["lab1_s"] + params["lab1_b"]
    return w_eff, b_eff


# ------------------------------- wrapper ----------------------------------- #
def _pick_tile(total, candidates):
    for c in candidates:
        if c <= total and total % c == 0:
            return c
    return total


def learnable_rep_block(x_nchw, params, kernel_size, stride=1):
    assert stride == 1  # TODO(synk): stride=2 path (strided conv, NO Hardswish/LAB2) not wired up
    K = kernel_size
    pad = (K - 1) // 2
    N, Cin, H, W = x_nchw.shape
    Cout = params["wk_list"][0].shape[0]
    HW = H * W
    L = (H + 2 * pad) * W + 2 * pad

    w_eff, b_eff = merge_reparam(params, K, Cin, Cout)

    # Glue: one bf16 pad+reshape pass over the activation; NO transpose needed
    # (channels stay in front, the kernel emits NCHW-flat directly).
    x_b = x_nchw.astype(jnp.bfloat16)
    x_lin = jnp.pad(x_b, ((0, 0), (0, 0), (pad, pad), (0, 0)))
    x_lin = x_lin.reshape(N, Cin, (H + 2 * pad) * W)
    x_lin = jnp.pad(x_lin, ((0, 0), (0, 0), (pad, pad)))          # (N, Cin, L)

    # Merged weight per tap: (K*K, Cout, Cin) bf16; bias + epilogue consts f32.
    w_taps = jnp.transpose(w_eff, (2, 3, 0, 1)).reshape(K * K, Cout, Cin)
    w_taps = w_taps.astype(jnp.bfloat16)
    b_col = b_eff.reshape(Cout, 1).astype(jnp.float32)
    act_consts = jnp.stack([params["lab2_s"] / 6.0,
                            params["lab2_b"]]).astype(jnp.float32)

    tile_m = _pick_tile(HW, (2048, 1024, 512, 256, 128))      # lane-dense output
    tile_co = _pick_tile(Cout, (256, 128, 64, 32, 16, 8))
    hw_tiles = HW // tile_m
    co_tiles = Cout // tile_co

    kernel = functools.partial(_rep_block_kernel, K=K, W=W, pad=pad,
                               tile_m=tile_m, hw_tiles=hw_tiles)

    out_flat = pl.pallas_call(
        kernel,
        out_shape=jax.ShapeDtypeStruct((N, Cout, HW), x_nchw.dtype),
        grid=(N, co_tiles, hw_tiles),
        in_specs=[
            pl.BlockSpec(memory_space=pltpu.MemorySpace.SMEM),                  # epilogue consts
            pl.BlockSpec((None, Cin, L), lambda n, co, hw: (n, 0, 0)),          # activation slab
            pl.BlockSpec((K * K, tile_co, Cin), lambda n, co, hw: (0, co, 0)),  # merged taps
            pl.BlockSpec((tile_co, 1), lambda n, co, hw: (co, 0)),              # merged bias
        ],
        out_specs=pl.BlockSpec((None, tile_co, tile_m),
                               lambda n, co, hw: (n, co, hw)),
        compiler_params=pltpu.CompilerParams(
            dimension_semantics=("parallel", "parallel", "parallel"),
            vmem_limit_bytes=32 * 1024 * 1024),
    )(act_consts, x_lin, w_taps, b_col)

    return out_flat.reshape(N, Cout, H, W)                       # already NCHW


# --------------------------- pure-JAX reference ----------------------------- #
def _bn_eval(x, bn):
    gamma, beta, mean, var = bn
    inv = gamma / jnp.sqrt(var + EPS)
    return x * inv[None, :, None, None] + (beta - mean * inv)[None, :, None, None]


def _conv_nchw(x, w, stride, pad):
    return lax.conv_general_dilated(
        x, w, window_strides=(stride, stride),
        padding=[(pad, pad), (pad, pad)],
        dimension_numbers=("NCHW", "OIHW", "NCHW"))


def reference_forward(x, params, kernel_size, stride=1):
    K = kernel_size
    pad = (K - 1) // 2
    out = 0.0
    if params.get("id_bn") is not None:
        out = out + _bn_eval(x, params["id_bn"])
    if params.get("w1") is not None:
        out = out + _bn_eval(_conv_nchw(x, params["w1"], stride, 0), params["bn1"])
    for wk, bnk in zip(params["wk_list"], params["bnk_list"]):
        out = out + _bn_eval(_conv_nchw(x, wk, stride, pad), bnk)
    out = params["lab1_s"] * out + params["lab1_b"]
    if stride != 2:
        out = out * jnp.clip(out + 3.0, 0.0, 6.0) / 6.0          # Hardswish
        out = params["lab2_s"] * out + params["lab2_b"]
    return out


# --------------------------------- main ------------------------------------ #
if __name__ == "__main__":
    key = jax.random.PRNGKey(0)
    kx, kp = jax.random.split(key)

    N, C, H, W = 2, 4, 16, 16           # in_ch == out_ch, stride == 1
    K = 3
    num_conv_branches = 2

    x = jax.random.normal(kx, (N, C, H, W), jnp.float32)
    params = init_params(kp, C, C, K, num_conv_branches)

    out = learnable_rep_block(x, params, K, stride=1)
    out = jax.block_until_ready(out)

    ref = reference_forward(x, params, K, stride=1)
    # bf16 activations/weights with f32 accumulation -> bf16-level tolerance.
    if not jnp.allclose(out, ref, atol=4e-2, rtol=4e-2):
        max_err = float(jnp.max(jnp.abs(out - ref)))
        raise AssertionError(f"Pallas kernel mismatch vs reference, max_err={max_err}")

    print("KERNEL_OK")
</pallas_src>

<mosaic_0001>
module attributes {stable_mosaic.version = 11 : i64} {
  func.func @_rep_block_kernel(%arg0: i32, %arg1: i32, %arg2: i32, %arg3: memref<2xf32, #tpu.memory_space<smem>>, %arg4: memref<1x4x290xbf16, #tpu.memory_space<vmem>>, %arg5: memref<9x4x4xbf16, #tpu.memory_space<vmem>>, %arg6: memref<4x1xf32, #tpu.memory_space<vmem>>, %arg7: memref<1x4x256xf32, #tpu.memory_space<vmem>>) attributes {dimension_semantics = [#tpu.dimension_semantics<parallel>, #tpu.dimension_semantics<parallel>, #tpu.dimension_semantics<parallel>], iteration_bounds = array<i64: 2, 1, 1>, scalar_prefetch = 0 : i64, scratch_operands = 0 : i64, tpu.core_type = #tpu.core_type<tc>, window_params = [{transform_indices = @transform_0, window_bounds = array<i64: 2>}, {transform_indices = @transform_1, window_bounds = array<i64: 1, 4, 290>}, {transform_indices = @transform_2, window_bounds = array<i64: 9, 4, 4>}, {transform_indices = @transform_3, window_bounds = array<i64: 4, 1>}, {transform_indices = @transform_4, window_bounds = array<i64: 1, 4, 256>}]} {
    %0 = tpu.iota {dimensions = array<i32: 1>} : vector<1x256xi32>
    %c0_i32 = arith.constant 0 : i32
    %1 = vector.broadcast %c0_i32 : i32 to vector<1x256xi32>
    %2 = arith.addi %1, %0 : vector<1x256xi32>
    %c16_i32 = arith.constant 16 : i32
    %c0_i32_0 = arith.constant 0 : i32
    %3 = arith.cmpi eq, %c16_i32, %c0_i32_0 : i32
    %c1_i32 = arith.constant 1 : i32
    %4 = arith.select %3, %c1_i32, %c16_i32 : i32
    %5 = vector.broadcast %4 : i32 to vector<1x256xi32>
    %6 = arith.remsi %2, %5 : vector<1x256xi32>
    %c0_i32_1 = arith.constant 0 : i32
    %7 = vector.broadcast %c0_i32_1 : i32 to vector<1x256xi32>
    %8 = arith.cmpi ne, %6, %7 : vector<1x256xi32>
    %c0_i32_2 = arith.constant 0 : i32
    %9 = vector.broadcast %c0_i32_2 : i32 to vector<1x256xi32>
    %10 = arith.cmpi slt, %6, %9 : vector<1x256xi32>
    %c0_i32_3 = arith.constant 0 : i32
    %11 = arith.cmpi slt, %4, %c0_i32_3 : i32
    %12 = vector.broadcast %11 : i1 to vector<1x256xi1>
    %13 = vector.broadcast %12 : vector<1x256xi1> to vector<1x256xi1>
    %14 = arith.xori %10, %13 : vector<1x256xi1>
    %15 = arith.andi %14, %8 : vector<1x256xi1>
    %16 = vector.broadcast %4 : i32 to vector<1x256xi32>
    %17 = arith.addi %6, %16 : vector<1x256xi32>
    %18 = arith.select %15, %17, %6 : vector<1x256xi1>, vector<1x256xi32>
    %cst = arith.constant 0.000000e+00 : f32
    %19 = vector.broadcast %cst : f32 to vector<4x256xf32>
    %cst_4 = arith.constant 0.000000e+00 : f32
    %20 = vector.broadcast %cst_4 : f32 to vector<4x256xf32>
    %c0 = arith.constant 0 : index
    %c0_5 = arith.constant 0 : index
    %c0_6 = arith.constant 0 : index
    %21 = vector.load %arg5[%c0, %c0_5, %c0_6] : memref<9x4x4xbf16, #tpu.memory_space<vmem>>, vector<1x4x4xbf16>
    %22 = vector.shape_cast %21 : vector<1x4x4xbf16> to vector<4x4xbf16>
    %c0_7 = arith.constant 0 : index
    %c0_8 = arith.constant 0 : index
    %c0_9 = arith.constant 0 : index
    %23 = vector.load %arg4[%c0_7, %c0_8, %c0_9] : memref<1x4x290xbf16, #tpu.memory_space<vmem>>, vector<1x4x256xbf16>
    %24 = vector.shape_cast %23 : vector<1x4x256xbf16> to vector<4x256xbf16>
    %cst_10 = arith.constant dense<0.000000e+00> : vector<4x256xf32>
    %25 = tpu.matmul %22, %24, %cst_10 {dimension_numbers = #tpu.dot_dimension_numbers<[1], [0], [0], [1], [0, 0, 1, 1], [], []>} : vector<4x4xbf16>, vector<4x256xbf16>, vector<4x256xf32> -> vector<4x256xf32>
    %26 = arith.addf %20, %25 : vector<4x256xf32>
    %c3 = arith.constant 3 : index
    %c0_11 = arith.constant 0 : index
    %c0_12 = arith.constant 0 : index
    %27 = vector.load %arg5[%c3, %c0_11, %c0_12] : memref<9x4x4xbf16, #tpu.memory_space<vmem>>, vector<1x4x4xbf16>
    %28 = vector.shape_cast %27 : vector<1x4x4xbf16> to vector<4x4xbf16>
    %c0_13 = arith.constant 0 : index
    %c0_14 = arith.constant 0 : index
    %c16 = arith.constant 16 : index
    %29 = vector.load %arg4[%c0_13, %c0_14, %c16] : memref<1x4x290xbf16, #tpu.memory_space<vmem>>, vector<1x4x256xbf16>
    %30 = vector.shape_cast %29 : vector<1x4x256xbf16> to vector<4x256xbf16>
    %cst_15 = arith.constant dense<0.000000e+00> : vector<4x256xf32>
    %31 = tpu.matmul %28, %30, %cst_15 {dimension_numbers = #tpu.dot_dimension_numbers<[1], [0], [0], [1], [0, 0, 1, 1], [], []>} : vector<4x4xbf16>, vector<4x256xbf16>, vector<4x256xf32> -> vector<4x256xf32>
    %32 = arith.addf %26, %31 : vector<4x256xf32>
    %c6 = arith.constant 6 : index
    %c0_16 = arith.constant 0 : index
    %c0_17 = arith.constant 0 : index
    %33 = vector.load %arg5[%c6, %c0_16, %c0_17] : memref<9x4x4xbf16, #tpu.memory_space<vmem>>, vector<1x4x4xbf16>
    %34 = vector.shape_cast %33 : vector<1x4x4xbf16> to vector<4x4xbf16>
    %c0_18 = arith.constant 0 : index
    %c0_19 = arith.constant 0 : index
    %c32 = arith.constant 32 : index
    %35 = vector.load %arg4[%c0_18, %c0_19, %c32] : memref<1x4x290xbf16, #tpu.memory_space<vmem>>, vector<1x4x256xbf16>
    %36 = vector.shape_cast %35 : vector<1x4x256xbf16> to vector<4x256xbf16>
    %cst_20 = arith.constant dense<0.000000e+00> : vector<4x256xf32>
    %37 = tpu.matmul %34, %36, %cst_20 {dimension_numbers = #tpu.dot_dimension_numbers<[1], [0], [0], [1], [0, 0, 1, 1], [], []>} : vector<4x4xbf16>, vector<4x256xbf16>, vector<4x256xf32> -> vector<4x256xf32>
    %38 = arith.addf %32, %37 : vector<4x256xf32>
    %c1_i32_21 = arith.constant 1 : i32
    %39 = vector.broadcast %c1_i32_21 : i32 to vector<1x256xi32>
    %40 = arith.cmpi sge, %18, %39 : vector<1x256xi32>
    %cst_22 = arith.constant 0.000000e+00 : f32
    %41 = vector.shape_cast %40 : vector<1x256xi1> to vector<1x256xi1>
    %42 = vector.broadcast %41 : vector<1x256xi1> to vector<4x256xi1>
    %43 = vector.broadcast %cst_22 : f32 to vector<4x256xf32>
    %44 = arith.select %42, %38, %43 : vector<4x256xi1>, vector<4x256xf32>
    %45 = arith.addf %19, %44 : vector<4x256xf32>
    %cst_23 = arith.constant 0.000000e+00 : f32
    %46 = vector.broadcast %cst_23 : f32 to vector<4x256xf32>
    %c1 = arith.constant 1 : index
    %c0_24 = arith.constant 0 : index
    %c0_25 = arith.constant 0 : index
    %47 = vector.load %arg5[%c1, %c0_24, %c0_25] : memref<9x4x4xbf16, #tpu.memory_space<vmem>>, vector<1x4x4xbf16>
    %48 = vector.shape_cast %47 : vector<1x4x4xbf16> to vector<4x4xbf16>
    %c0_26 = arith.constant 0 : index
    %c0_27 = arith.constant 0 : index
    %c1_28 = arith.constant 1 : index
    %49 = vector.load %arg4[%c0_26, %c0_27, %c1_28] : memref<1x4x290xbf16, #tpu.memory_space<vmem>>, vector<1x4x256xbf16>
    %50 = vector.shape_cast %49 : vector<1x4x256xbf16> to vector<4x256xbf16>
    %cst_29 = arith.constant dense<0.000000e+00> : vector<4x256xf32>
    %51 = tpu.matmul %48, %50, %cst_29 {dimension_numbers = #tpu.dot_dimension_numbers<[1], [0], [0], [1], [0, 0, 1, 1], [], []>} : vector<4x4xbf16>, vector<4x256xbf16>, vector<4x256xf32> -> vector<4x256xf32>
    %52 = arith.addf %46, %51 : vector<4x256xf32>
    %c4 = arith.constant 4 : index
    %c0_30 = arith.constant 0 : index
    %c0_31 = arith.constant 0 : index
    %53 = vector.load %arg5[%c4, %c0_30, %c0_31] : memref<9x4x4xbf16, #tpu.memory_space<vmem>>, vector<1x4x4xbf16>
    %54 = vector.shape_cast %53 : vector<1x4x4xbf16> to vector<4x4xbf16>
    %c0_32 = arith.constant 0 : index
    %c0_33 = arith.constant 0 : index
    %c17 = arith.constant 17 : index
    %55 = vector.load %arg4[%c0_32, %c0_33, %c17] : memref<1x4x290xbf16, #tpu.memory_space<vmem>>, vector<1x4x256xbf16>
    %56 = vector.shape_cast %55 : vector<1x4x256xbf16> to vector<4x256xbf16>
    %cst_34 = arith.constant dense<0.000000e+00> : vector<4x256xf32>
    %57 = tpu.matmul %54, %56, %cst_34 {dimension_numbers = #tpu.dot_dimension_numbers<[1], [0], [0], [1], [0, 0, 1, 1], [], []>} : vector<4x4xbf16>, vector<4x256xbf16>, vector<4x256xf32> -> vector<4x256xf32>
    %58 = arith.addf %52, %57 : vector<4x256xf32>
    %c7 = arith.constant 7 : index
    %c0_35 = arith.constant 0 : index
    %c0_36 = arith.constant 0 : index
    %59 = vector.load %arg5[%c7, %c0_35, %c0_36] : memref<9x4x4xbf16, #tpu.memory_space<vmem>>, vector<1x4x4xbf16>
    %60 = vector.shape_cast %59 : vector<1x4x4xbf16> to vector<4x4xbf16>
    %c0_37 = arith.constant 0 : index
    %c0_38 = arith.constant 0 : index
    %c33 = arith.constant 33 : index
    %61 = vector.load %arg4[%c0_37, %c0_38, %c33] : memref<1x4x290xbf16, #tpu.memory_space<vmem>>, vector<1x4x256xbf16>
    %62 = vector.shape_cast %61 : vector<1x4x256xbf16> to vector<4x256xbf16>
    %cst_39 = arith.constant dense<0.000000e+00> : vector<4x256xf32>
    %63 = tpu.matmul %60, %62, %cst_39 {dimension_numbers = #tpu.dot_dimension_numbers<[1], [0], [0], [1], [0, 0, 1, 1], [], []>} : vector<4x4xbf16>, vector<4x256xbf16>, vector<4x256xf32> -> vector<4x256xf32>
    %64 = arith.addf %58, %63 : vector<4x256xf32>
    %65 = arith.addf %45, %64 : vector<4x256xf32>
    %cst_40 = arith.constant 0.000000e+00 : f32
    %66 = vector.broadcast %cst_40 : f32 to vector<4x256xf32>
    %c2 = arith.constant 2 : index
    %c0_41 = arith.constant 0 : index
    %c0_42 = arith.constant 0 : index
    %67 = vector.load %arg5[%c2, %c0_41, %c0_42] : memref<9x4x4xbf16, #tpu.memory_space<vmem>>, vector<1x4x4xbf16>
    %68 = vector.shape_cast %67 : vector<1x4x4xbf16> to vector<4x4xbf16>
    %c0_43 = arith.constant 0 : index
    %c0_44 = arith.constant 0 : index
    %c2_45 = arith.constant 2 : index
    %69 = vector.load %arg4[%c0_43, %c0_44, %c2_45] : memref<1x4x290xbf16, #tpu.memory_space<vmem>>, vector<1x4x256xbf16>
    %70 = vector.shape_cast %69 : vector<1x4x256xbf16> to vector<4x256xbf16>
    %cst_46 = arith.constant dense<0.000000e+00> : vector<4x256xf32>
    %71 = tpu.matmul %68, %70, %cst_46 {dimension_numbers = #tpu.dot_dimension_numbers<[1], [0], [0], [1], [0, 0, 1, 1], [], []>} : vector<4x4xbf16>, vector<4x256xbf16>, vector<4x256xf32> -> vector<4x256xf32>
    %72 = arith.addf %66, %71 : vector<4x256xf32>
    %c5 = arith.constant 5 : index
    %c0_47 = arith.constant 0 : index
    %c0_48 = arith.constant 0 : index
    %73 = vector.load %arg5[%c5, %c0_47, %c0_48] : memref<9x4x4xbf16, #tpu.memory_space<vmem>>, vector<1x4x4xbf16>
    %74 = vector.shape_cast %73 : vector<1x4x4xbf16> to vector<4x4xbf16>
    %c0_49 = arith.constant 0 : index
    %c0_50 = arith.constant 0 : index
    %c18 = arith.constant 18 : index
    %75 = vector.load %arg4[%c0_49, %c0_50, %c18] : memref<1x4x290xbf16, #tpu.memory_space<vmem>>, vector<1x4x256xbf16>
    %76 = vector.shape_cast %75 : vector<1x4x256xbf16> to vector<4x256xbf16>
    %cst_51 = arith.constant dense<0.000000e+00> : vector<4x256xf32>
    %77 = tpu.matmul %74, %76, %cst_51 {dimension_numbers = #tpu.dot_dimension_numbers<[1], [0], [0], [1], [0, 0, 1, 1], [], []>} : vector<4x4xbf16>, vector<4x256xbf16>, vector<4x256xf32> -> vector<4x256xf32>
    %78 = arith.addf %72, %77 : vector<4x256xf32>
    %c8 = arith.constant 8 : index
    %c0_52 = arith.constant 0 : index
    %c0_53 = arith.constant 0 : index
    %79 = vector.load %arg5[%c8, %c0_52, %c0_53] : memref<9x4x4xbf16, #tpu.memory_space<vmem>>, vector<1x4x4xbf16>
    %80 = vector.shape_cast %79 : vector<1x4x4xbf16> to vector<4x4xbf16>
    %c0_54 = arith.constant 0 : index
    %c0_55 = arith.constant 0 : index
    %c34 = arith.constant 34 : index
    %81 = vector.load %arg4[%c0_54, %c0_55, %c34] : memref<1x4x290xbf16, #tpu.memory_space<vmem>>, vector<1x4x256xbf16>
    %82 = vector.shape_cast %81 : vector<1x4x256xbf16> to vector<4x256xbf16>
    %cst_56 = arith.constant dense<0.000000e+00> : vector<4x256xf32>
    %83 = tpu.matmul %80, %82, %cst_56 {dimension_numbers = #tpu.dot_dimension_numbers<[1], [0], [0], [1], [0, 0, 1, 1], [], []>} : vector<4x4xbf16>, vector<4x256xbf16>, vector<4x256xf32> -> vector<4x256xf32>
    %84 = arith.addf %78, %83 : vector<4x256xf32>
    %c15_i32 = arith.constant 15 : i32
    %85 = vector.broadcast %c15_i32 : i32 to vector<1x256xi32>
    %86 = arith.cmpi slt, %18, %85 : vector<1x256xi32>
    %cst_57 = arith.constant 0.000000e+00 : f32
    %87 = vector.shape_cast %86 : vector<1x256xi1> to vector<1x256xi1>
    %88 = vector.broadcast %87 : vector<1x256xi1> to vector<4x256xi1>
    %89 = vector.broadcast %cst_57 : f32 to vector<4x256xf32>
    %90 = arith.select %88, %84, %89 : vector<4x256xi1>, vector<4x256xf32>
    %91 = arith.addf %65, %90 : vector<4x256xf32>
    %c0_58 = arith.constant 0 : index
    %c0_59 = arith.constant 0 : index
    %92 = vector.load %arg6[%c0_58, %c0_59] : memref<4x1xf32, #tpu.memory_space<vmem>>, vector<4x1xf32>
    %93 = vector.broadcast %92 : vector<4x1xf32> to vector<4x256xf32>
    %94 = arith.addf %91, %93 : vector<4x256xf32>
    %cst_60 = arith.constant 3.000000e+00 : f32
    %95 = vector.broadcast %cst_60 : f32 to vector<4x256xf32>
    %96 = arith.addf %94, %95 : vector<4x256xf32>
    %cst_61 = arith.constant 0.000000e+00 : f32
    %cst_62 = arith.constant 6.000000e+00 : f32
    %97 = vector.broadcast %cst_61 : f32 to vector<4x256xf32>
    %98 = arith.maximumf %97, %96 : vector<4x256xf32>
    %99 = vector.broadcast %cst_62 : f32 to vector<4x256xf32>
    %100 = arith.minimumf %99, %98 : vector<4x256xf32>
    %101 = arith.mulf %94, %100 : vector<4x256xf32>
    %c0_63 = arith.constant 0 : index
    %102 = memref.load %arg3[%c0_63] : memref<2xf32, #tpu.memory_space<smem>>
    %103 = vector.broadcast %102 : f32 to vector<4x256xf32>
    %104 = arith.mulf %103, %101 : vector<4x256xf32>
    %c1_64 = arith.constant 1 : index
    %105 = memref.load %arg3[%c1_64] : memref<2xf32, #tpu.memory_space<smem>>
    %106 = vector.broadcast %105 : f32 to vector<4x256xf32>
    %107 = arith.addf %104, %106 : vector<4x256xf32>
    %c0_65 = arith.constant 0 : index
    %c0_66 = arith.constant 0 : index
    %c0_67 = arith.constant 0 : index
    %108 = vector.load %arg7[%c0_65, %c0_66, %c0_67] : memref<1x4x256xf32, #tpu.memory_space<vmem>>, vector<1x4x256xf32>
    %109 = vector.shape_cast %108 : vector<1x4x256xf32> to vector<4x256xf32>
    %110 = vector.shape_cast %107 : vector<4x256xf32> to vector<1x4x256xf32>
    tpu.vector_store %arg7[%c0_65, %c0_66, %c0_67], %110 {strides = array<i32>} : memref<1x4x256xf32, #tpu.memory_space<vmem>>, vector<1x4x256xf32>,
    return
  }
  func.func @transform_0(%arg0: i32, %arg1: i32, %arg2: i32) -> i32 {
    %c0_i32 = arith.constant 0 : i32
    %c0_i32_0 = arith.constant 0 : i32
    return %c0_i32 : i32
  }
  func.func @transform_1(%arg0: i32, %arg1: i32, %arg2: i32) -> (i32, i32, i32) {
    %c0_i32 = arith.constant 0 : i32
    %c0_i32_0 = arith.constant 0 : i32
    %c0_i32_1 = arith.constant 0 : i32
    return %arg0, %c0_i32, %c0_i32_0 : i32, i32, i32
  }
  func.func @transform_2(%arg0: i32, %arg1: i32, %arg2: i32) -> (i32, i32, i32) {
    %c0_i32 = arith.constant 0 : i32
    %c0_i32_0 = arith.constant 0 : i32
    %c0_i32_1 = arith.constant 0 : i32
    return %c0_i32, %arg1, %c0_i32_0 : i32, i32, i32
  }
  func.func @transform_3(%arg0: i32, %arg1: i32, %arg2: i32) -> (i32, i32) {
    %c0_i32 = arith.constant 0 : i32
    %c0_i32_0 = arith.constant 0 : i32
    return %arg1, %c0_i32 : i32, i32
  }
  func.func @transform_4(%arg0: i32, %arg1: i32, %arg2: i32) -> (i32, i32, i32) {
    %c0_i32 = arith.constant 0 : i32
    return %arg0, %arg1, %arg2 : i32, i32, i32
  }
}

</mosaic_0001>

<llo_original>
// kernel: tpu_custom_call.1
$region0: #{tpu_custom_call.1}
  #allocation0 [shape = 'u32[]', space=smem, size = 0x4, offset = 0x4, fixed_abs, tag = 'smem constant byte address 0x4 - core index']
  #allocation1 [shape = 'u32[144,128]{1,0:T(1,128)}', space=vmem, size = 0x12000, scoped, tag = 'internal scratch']
  %s0 = inlined_call_operand.vmem [shape: f32[2], index: 0, kind: input, shape index: {}]
  %s1 = inlined_call_operand.vmem [shape: bf16[2,4,290], index: 1, kind: input, shape index: {}]
  %s2 = inlined_call_operand.vmem [shape: bf16[9,4,4], index: 2, kind: input, shape index: {}]
  %s3 = inlined_call_operand.vmem [shape: f32[4,1], index: 3, kind: input, shape index: {}]
  %s4 = inlined_call_operand.hbm [shape: f32[2,4,256], index: 4, kind: output, shape index: {}]
  %s5 = sld [smem:[#allocation0]]
  $region53: #{tpu_custom_call.1} parent=0
    _
  %s7 = ssub.s32 1, %s5
  %s8 = scalar_select 0, %s7, %s5
  $region1: #{tpu_custom_call.1} parent=0
    #allocation2 [shape = 'u8[512]{0}', space=smem, size = 0x200, scoped, tag = 'input window, operand 0, single buffered']
    #allocation3 [shape = 's32[2]{0}', space=sflag, size = 0x8, scoped, tag = 'scoped memory for tpu_custom_call.1']
    #allocation4 [shape = 's32[2]{0}', space=sflag, size = 0x8, scoped, tag = 'scoped memory for tpu_custom_call.1']
    #allocation5 [shape = 'u8[8192]{0}', space=vmem, size = 0x2000, scoped, tag = 'output window, operand 0']
    %9 = vsyncpa [#allocation4], 0
    %10 = vsyncpa [#allocation3], 0
    %s11 = scalar_lea.sflag [#allocation3], 1
    %12 = vsyncpa %s11, 0
    loop: start=0, step=1, limit=4
    $region2: #{tpu_custom_call.1} parent=1 // loop_pre_header
      _
    $region3: #{tpu_custom_call.1} parent=1 // loop_header
      %s14 = sphi 0, %s18
      %p15 = scmp.ge.s32.totalorder %s14, 4
      %s21 = sphi 0, %s40
      %s22 = sphi 0, %s36
      %s23 = sphi 0, %s32
      %s24 = sphi 0, %s21
      %s25 = sphi 0, %s22
      %s26 = sphi 0, %s23
      %s27 = sphi 0, %s24
      %s28 = sphi 0, %s25
      %s29 = sphi 0, %s26
      %s41 = sphi 0, %s41
      %s43 = sphi 0, %s41
      %s44 = sphi 0, %s43
      %s58 = sphi 0, %s44
      %s64 = sphi 0, %s66
      %s67 = sphi 0, %s64
      %s68 = sphi 0, %s67
      %s84 = sphi 0, %s68
      %s90 = sphi 0, %s92
      %s93 = sphi 0, %s90
      %s94 = sphi 0, %s93
      %s110 = sphi 0, %s94
      %s116 = sphi 0, %s118
      %s119 = sphi 0, %s116
      %s120 = sphi 0, %s119
      %s136 = sphi 0, %s120
      %s146 = sphi 0, %s148
      %s149 = sphi 0, %s146
      %s150 = sphi 0, %s149
      %s166 = sphi 0, %s150
    $region4: #{tpu_custom_call.1} parent=1 // loop_header_branch
      %17 = sbr.rel (%p15) target = $region8
    $region5: #{tpu_custom_call.1} parent=1 // loop_body
      %s19 = ssub.s32 %s14, 1
      %s20 = ssub.s32 %s14, 2
      %s30 = sadd.s32 1, %s23
      %p31 = scmp.ge.s32.totalorder %s30, 1
      %s32 = scalar_select %p31, 0, %s30
      %s33 = sadd.s32 1, %s22
      %s34 = scalar_select %p31, %s33, %s22
      %p35 = scmp.ge.s32.totalorder %s34, 1
      %s36 = scalar_select %p35, 0, %s34
      %s37 = sadd.s32 1, %s21
      %s38 = scalar_select %p35, %s37, %s21
      %p39 = scmp.ge.s32.totalorder %s38, 2
      %s40 = scalar_select %p39, 0, %s38
      %s42 = sadd.s32 %s41, 1
      %p45 = scmp.eq.s32.totalorder %s14, 1
      %p46 = scmp.ne.s32.totalorder %s41, %s43
      %p47 = scmp.eq.s32.totalorder %s14, 0
      %p48 = por %p46, %p47
      %p49 = scmp.ne.s32.totalorder %s41, %s43
      %p50 = scmp.eq.s32.totalorder %s19, 1
      %p51 = por %p49, %p50
      %p52 = scmp.ne.s32.totalorder %s43, %s44
      %p53 = scmp.eq.s32.totalorder %s19, 0
      %p54 = por %p52, %p53
      %p55 = scmp.ne.s32.totalorder %s43, %s44
      %p56 = scmp.eq.s32.totalorder %s20, 1
      %p57 = por %p55, %p56
      %p59 = scmp.ne.s32.totalorder %s44, %s58
      %p60 = scmp.eq.s32.totalorder %s20, 0
      %p61 = por %p59, %p60
      %s62 = ssub.s32 %s21, %s40
      %p63 = scmp.eq.s32.totalorder %s62, 0
      %s65 = sadd.s32 %s64, 1
      %s66 = scalar_select %p63, %s64, %s65
      %p69 = pneg %p63
      %p70 = scmp.eq.s32.totalorder %s14, 1
      %p71 = por %p69, %p70
      %p72 = scmp.ne.s32.totalorder %s64, %s67
      %p73 = scmp.eq.s32.totalorder %s14, 0
      %p74 = por %p72, %p73
      %p75 = scmp.ne.s32.totalorder %s64, %s67
      %p76 = scmp.eq.s32.totalorder %s19, 1
      %p77 = por %p75, %p76
      %p78 = scmp.ne.s32.totalorder %s67, %s68
      %p79 = scmp.eq.s32.totalorder %s19, 0
      %p80 = por %p78, %p79
      %p81 = scmp.ne.s32.totalorder %s67, %s68
      %p82 = scmp.eq.s32.totalorder %s20, 1
      %p83 = por %p81, %p82
      %p85 = scmp.ne.s32.totalorder %s68, %s84
      %p86 = scmp.eq.s32.totalorder %s20, 0
      %p87 = por %p85, %p86
      %s88 = ssub.s32 %s22, %s36
      %p89 = scmp.eq.s32.totalorder %s88, 0
      %s91 = sadd.s32 %s90, 1
      %s92 = scalar_select %p89, %s90, %s91
      %p95 = pneg %p89
      %p96 = scmp.eq.s32.totalorder %s14, 1
      %p97 = por %p95, %p96
      %p98 = scmp.ne.s32.totalorder %s90, %s93
      %p99 = scmp.eq.s32.totalorder %s14, 0
      %p100 = por %p98, %p99
      %p101 = scmp.ne.s32.totalorder %s90, %s93
      %p102 = scmp.eq.s32.totalorder %s19, 1
      %p103 = por %p101, %p102
      %p104 = scmp.ne.s32.totalorder %s93, %s94
      %p105 = scmp.eq.s32.totalorder %s19, 0
      %p106 = por %p104, %p105
      %p107 = scmp.ne.s32.totalorder %s93, %s94
      %p108 = scmp.eq.s32.totalorder %s20, 1
      %p109 = por %p107, %p108
      %p111 = scmp.ne.s32.totalorder %s94, %s110
      %p112 = scmp.eq.s32.totalorder %s20, 0
      %p113 = por %p111, %p112
      %s114 = ssub.s32 %s22, %s36
      %p115 = scmp.eq.s32.totalorder %s114, 0
      %s117 = sadd.s32 %s116, 1
      %s118 = scalar_select %p115, %s116, %s117
      %p121 = pneg %p115
      %p122 = scmp.eq.s32.totalorder %s14, 1
      %p123 = por %p121, %p122
      %p124 = scmp.ne.s32.totalorder %s116, %s119
      %p125 = scmp.eq.s32.totalorder %s14, 0
      %p126 = por %p124, %p125
      %p127 = scmp.ne.s32.totalorder %s116, %s119
      %p128 = scmp.eq.s32.totalorder %s19, 1
      %p129 = por %p127, %p128
      %p130 = scmp.ne.s32.totalorder %s119, %s120
      %p131 = scmp.eq.s32.totalorder %s19, 0
      %p132 = por %p130, %p131
      %p133 = scmp.ne.s32.totalorder %s119, %s120
      %p134 = scmp.eq.s32.totalorder %s20, 1
      %p135 = por %p133, %p134
      %p137 = scmp.ne.s32.totalorder %s120, %s136
      %p138 = scmp.eq.s32.totalorder %s20, 0
      %p139 = por %p137, %p138
      %s140 = ssub.s32 %s21, %s40
      %s141 = ssub.s32 %s22, %s36
      %s142 = sor.u32 %s140, %s141
      %s143 = ssub.s32 %s23, %s32
      %s144 = sor.u32 %s142, %s143
      %p145 = scmp.eq.s32.totalorder %s144, 0
      %s147 = sadd.s32 %s146, 1
      %s148 = scalar_select %p145, %s146, %s147
      %p151 = pneg %p145
      %p152 = scmp.eq.s32.totalorder %s14, 1
      %p153 = por %p151, %p152
      %p154 = scmp.ne.s32.totalorder %s146, %s149
      %p155 = scmp.eq.s32.totalorder %s14, 0
      %p156 = por %p154, %p155
      %p157 = scmp.ne.s32.totalorder %s146, %s149
      %p158 = scmp.eq.s32.totalorder %s19, 1
      %p159 = por %p157, %p158
      %p160 = scmp.ne.s32.totalorder %s149, %s150
      %p161 = scmp.eq.s32.totalorder %s19, 0
      %p162 = por %p160, %p161
      %p163 = scmp.ne.s32.totalorder %s149, %s150
      %p164 = scmp.eq.s32.totalorder %s20, 1
      %p165 = por %p163, %p164
      %p167 = scmp.ne.s32.totalorder %s150, %s166
      %p168 = scmp.eq.s32.totalorder %s20, 0
      %p169 = por %p167, %p168
      %p170 = scmp.le.s32.totalorder 1, %s14
      %p171 = scmp.lt.s32.totalorder %s14, 3
      %p172 = pnand %p170, %p171
      %p173 = pneg %p172
      // Predicated region
      $region9: #{tpu_custom_call.1} parent=5 // pred_check
        _
      $region10: #{tpu_custom_call.1} parent=5 // pred_check_branch
        %175 = sbr.rel (%p172) target = $region12
      $region11: #{tpu_custom_call.1} parent=5 // pred_region
        %s176 = ssub.s32 %s14, 1
        // Predicated region
        $region13: #{tpu_custom_call.1} parent=11 // pred_check
          %p177 = pneg %p54
        $region14: #{tpu_custom_call.1} parent=11 // pred_check_branch
          %179 = sbr.rel (%p177) target = $region16
        $region15: #{tpu_custom_call.1} parent=11 // pred_region
          %s181 = ssub.s32 16, 16
          %182 = vsyncadd [#allocation4], %s181
          %s184 = sshll.u32 %s0, 4
          %s185 = int_to_ptr.vmem [resolvable:$true] %s184
          %187 = dma.vmem_to_smem %s185, 16, [#allocation2], [#allocation4]
        $region16: #{tpu_custom_call.1} parent=11 // pred_fallthru
          _
        // Predicated region
        $region17: #{tpu_custom_call.1} parent=11 // pred_check
          %p188 = pneg %p106
        $region18: #{tpu_custom_call.1} parent=11 // pred_check_branch
          %190 = sbr.rel (%p188) target = $region20
        $region19: #{tpu_custom_call.1} parent=11 // pred_region
          %p191 = scmp.lt.s32.totalorder %s25, 0
          %s192 = scalar_select %p191, %s25, 0
          %s193 = smul.addr %s192, 2
          %s194 = scalar_lea.vmem %s2, %s193
        $region20: #{tpu_custom_call.1} parent=11 // pred_fallthru
          _
        // Predicated region
        $region21: #{tpu_custom_call.1} parent=11 // pred_check
          %p195 = pneg %p132
        $region22: #{tpu_custom_call.1} parent=11 // pred_check_branch
          %197 = sbr.rel (%p195) target = $region24
        $region23: #{tpu_custom_call.1} parent=11 // pred_region
          %p198 = scmp.lt.s32.totalorder %s25, 0
          %s199 = scalar_select %p198, %s25, 0
          %s200 = smul.addr %s199, 4
          %s201 = scalar_lea.vmem %s3, %s200
        $region24: #{tpu_custom_call.1} parent=11 // pred_fallthru
          _
      $region12: #{tpu_custom_call.1} parent=5 // pred_fallthru
        _
      %p202 = scmp.lt.s32.totalorder %s14, 2
      // Predicated region
      $region25: #{tpu_custom_call.1} parent=5 // pred_check
        %p203 = pneg %p202
      $region26: #{tpu_custom_call.1} parent=5 // pred_check_branch
        %205 = sbr.rel (%p203) target = $region28
      $region27: #{tpu_custom_call.1} parent=5 // pred_region
        // Predicated region
        $region29: #{tpu_custom_call.1} parent=27 // pred_check
          %p206 = pneg %p74
        $region30: #{tpu_custom_call.1} parent=27 // pred_check_branch
          %208 = sbr.rel (%p206) target = $region32
        $region31: #{tpu_custom_call.1} parent=27 // pred_region
          %p209 = scmp.lt.s32.totalorder %s21, 1
          %s210 = scalar_select %p209, %s21, 1
          %s211 = smul.addr %s210, 3
          %s212 = smul.addr %s211, 2
          %s213 = scalar_lea.vmem %s1, %s212
        $region32: #{tpu_custom_call.1} parent=27 // pred_fallthru
          _
      $region28: #{tpu_custom_call.1} parent=5 // pred_fallthru
        _
      %p214 = scmp.le.s32.totalorder 1, %s14
      %p215 = scmp.lt.s32.totalorder %s14, 3
      %p216 = pnand %p214, %p215
      %p217 = pneg %p216
      // Predicated region
      $region33: #{tpu_custom_call.1} parent=5 // pred_check
        _
      $region34: #{tpu_custom_call.1} parent=5 // pred_check_branch
        %219 = sbr.rel (%p216) target = $region36
      $region35: #{tpu_custom_call.1} parent=5 // pred_region
        %s220 = ssub.s32 %s14, 1
        // Predicated region
        $region37: #{tpu_custom_call.1} parent=35 // pred_check
          %p221 = pneg %p54
        $region38: #{tpu_custom_call.1} parent=35 // pred_check_branch
          %223 = sbr.rel (%p221) target = $region40
        $region39: #{tpu_custom_call.1} parent=35 // pred_region
          %224 = dma.done [#allocation4], 16
        $region40: #{tpu_custom_call.1} parent=35 // pred_fallthru
          _
        %225 = sfence
        %p226 = pneg %p54
        %p227 = pneg %p51
        %p228 = scmp.lt.s32.totalorder %s24, 1
        %s229 = scalar_select %p228, %s24, 1
        %s230 = smul.addr %s229, 3
        %s231 = smul.addr %s230, 2
        %s232 = scalar_lea.vmem %s1, %s231
        %p233 = pneg %p80
        %p234 = pneg %p77
        %p235 = scmp.lt.s32.totalorder %s25, 0
        %s236 = scalar_select %p235, %s25, 0
        %s237 = smul.addr %s236, 2
        %s238 = scalar_lea.vmem %s2, %s237
        %p239 = pneg %p106
        %p240 = pneg %p103
        %p241 = scmp.lt.s32.totalorder %s25, 0
        %s242 = scalar_select %p241, %s25, 0
        %s243 = smul.addr %s242, 4
        %s244 = scalar_lea.vmem %s3, %s243
        %p245 = pneg %p132
        %p246 = pneg %p129
        %p247 = pneg %p162
        %p248 = pneg %p159
        %s249 = sand.u32 %s149, 1
        %s250 = scalar_lea.sflag [#allocation3], %s249
        %s251 = sand.u32 %s149, 1
        %s252 = smul.addr %s251, 8
        %s253 = scalar_lea.vmem [#allocation5], %s252
        %p254 = scmp.lt.s32.totalorder %s24, 1
        %s255 = scalar_select %p254, %s24, 1
        %s256 = smul.addr %s255, 3
        %s257 = smul.addr %s256, 2
        %s258 = scalar_lea.vmem %s1, %s257
        %p259 = scmp.lt.s32.totalorder %s25, 0
        %s260 = scalar_select %p259, %s25, 0
        %s261 = smul.addr %s260, 2
        %s262 = scalar_lea.vmem %s2, %s261
        %p263 = scmp.lt.s32.totalorder %s25, 0
        %s264 = scalar_select %p263, %s25, 0
        %s265 = smul.addr %s264, 4
        %s266 = scalar_lea.vmem %s3, %s265
        %s267 = smul.u32 2, %s26
        %v269 = vlaneseq
        %v270 = vand.u32 %v269, 127
        %v271 = vadd.s32 %v270, 128
        %vm272 = vcmp.lt.s32.totalorder %v270, 0
        %v273 = vsub.s32 0, %v270
        %v274 = vsel %vm272, %v273, %v270
        %v275 = vshrl.u32 %v274, 4
        %v276 = vand.u32 %v274, 15
        %v277 = vsub.s32 0, %v276
        %v278 = vsel %vm272, %v277, %v276
        %vm279 = vcmp.lt.s32.totalorder %v271, 0
        %v280 = vsub.s32 0, %v271
        %v281 = vsel %vm279, %v280, %v271
        %v282 = vshrl.u32 %v281, 4
        %v283 = vand.u32 %v281, 15
        %v284 = vsub.s32 0, %v283
        %v285 = vsel %vm279, %v284, %v283
        %vm286 = vcmp.ne.s32.totalorder %v278, 0
        %vm287 = vcmp.ne.s32.totalorder %v285, 0
        %vm288 = vcmp.lt.s32.totalorder %v278, 0
        %vm289 = vcmp.lt.s32.totalorder %v285, 0
        %vm290 = vmand %vm288, %vm286
        %vm291 = vmand %vm289, %vm287
        %v292 = vadd.s32 %v278, 16
        %v293 = vadd.s32 %v285, 16
        %v294 = vsel %vm290, %v292, %v278
        %v295 = vsel %vm291, %v293, %v285
        %v296 = vld [vmem:[%s262] sm:$0x3]
        %v297 = vld [vmem:[%s258] sm:$0xf]
        %s298 = scalar_lea.vmem %s262, 6
        %v299 = vld [vmem:[%s298] sm:$0x3]
        %v300 = vld [vmem:[%s258] sm:$0x3f]
        %v302 = vcombine.high %v300, %v300
        %v304 = vunpack.c.l.s4 1983009808
        %v305 = vunpack.c.0.s8 %v304
        %v306 = vlaneseq
        %v307 = vshrl.u32 %v306, 7
        %v308 = vsub.s32 %v305, %v307
        %v309 = vrot.slane %v300, %v308
        %v311 = vunpack.c.l.s4 1983009808
        %v312 = vunpack.c.0.s8 %v311
        %v313 = vlaneseq
        %v314 = vshrl.u32 %v313, 7
        %v315 = vsub.s32 %v312, %v314
        %v316 = vrot.slane %v302, %v315
        %v317 = vcombine.high %v309, %v309
        %318 = vrot.lane.b32.xlu0 %v309, 112
        %v319 = vpop.permute.xlu0 %318
        %320 = vrot.lane.b32.xlu0 %v317, 112
        %v321 = vpop.permute.xlu0 %320
        %322 = vrot.lane.b32.xlu0 %v316, 112
        %v323 = vpop.permute.xlu0 %322
        %vm324 = vcmask 916480
        %v325 = vsel %vm324, %v319, %v321
        %v326 = vsel %vm324, %v321, %v323
        %vm327 = vcmask 31744
        %v329 = vsel %vm327, %v299, 0
        %vm331 = vcmask 1041408
        %v333 = vsel %vm331, %v325, 0
        %v336 = vsel %vm331, %v326, 0
        %338 = vmatprep.subr.bf16.mxu0 %v336
        %339 = vmatpush1.bf16.msra.mxu0 %v333
        %340 = vmatprep.subr.bf16.mxu0 0
        %341 = vmatpush1.bf16.msra.mxu0 0
        %342 = vmatprep.subr.bf16.mxu0 0
        %343 = vmatpush1.bf16.msra.mxu0 0
        %344 = vmatprep.subr.bf16.mxu0 0
        %345 = vmatpush1.bf16.msra.mxu0 0
        %346 = vmatprep.subr.bf16.mxu0 0
        %347 = vmatpush1.bf16.msra.mxu0 0
        %348 = vmatprep.subr.bf16.mxu0 0
        %349 = vmatpush1.bf16.msra.mxu0 0
        %350 = vmatprep.subr.bf16.mxu0 0
        %351 = vmatpush1.bf16.msra.mxu0 0
        %352 = vmatprep.subr.bf16.mxu0 0
        %353 = vmatpush1.bf16.msra.mxu0 0
        %354 = vmatprep.subr.bf16.mxu0 0
        %355 = vmatpush1.bf16.msra.mxu0 0
        %356 = vmatprep.subr.bf16.mxu0 0
        %357 = vmatpush1.bf16.msra.mxu0 0
        %358 = vmatprep.subr.bf16.mxu0 0
        %359 = vmatpush1.bf16.msra.mxu0 0
        %360 = vmatprep.subr.bf16.mxu0 0
        %361 = vmatpush1.bf16.msra.mxu0 0
        %362 = vmatprep.subr.bf16.mxu0 0
        %363 = vmatpush1.bf16.msra.mxu0 0
        %364 = vmatprep.subr.bf16.mxu0 0
        %365 = vmatpush1.bf16.msra.mxu0 0
        %366 = vmatprep.subr.bf16.mxu0 0
        %367 = vmatpush1.bf16.msra.mxu0 0
        %368 = vmatprep.subr.bf16.mxu0 0
        %369 = vmatpush1.bf16.msra.mxu0 0
        %370 = vmatprep.mubr.bf16.mxu0 0
        %371 = vmatmul.mubr.bf16.gmra.mrb[0].mxu0 %v329
        %v372 = vpop.f32.mrb[0].mxu0
        %v373 = vadd.f32 0.0, %v372
        %v374 = vpop.f32.mrb[0].mxu0
        %v375 = vadd.f32 0.0, %v374
        %v376 = vpop.f32.mrb[0].mxu0
        %v377 = vpop.f32.mrb[0].mxu0
        %378 = vdwg.mxu0
        %v381 = vunpack.c.l.s4 1983009808
        %v382 = vunpack.c.0.s8 %v381
        %v383 = vlaneseq
        %v384 = vshrl.u32 %v383, 7
        %v385 = vsub.s32 %v382, %v384
        %v386 = vrot.slane %v297, %v385
        %v387 = vcombine.high %v386, %v386
        %v389 = vsel %vm327, %v296, 0
        %v392 = vsel %vm331, %v386, 0
        %v395 = vsel %vm331, %v387, 0
        %397 = vmatprep.subr.bf16.mxu0 %v395
        %398 = vmatpush1.bf16.msra.mxu0 %v392
        %399 = vmatprep.subr.bf16.mxu0 0
        %400 = vmatpush1.bf16.msra.mxu0 0
        %401 = vmatprep.subr.bf16.mxu0 0
        %402 = vmatpush1.bf16.msra.mxu0 0
        %403 = vmatprep.subr.bf16.mxu0 0
        %404 = vmatpush1.bf16.msra.mxu0 0
        %405 = vmatprep.subr.bf16.mxu0 0
        %406 = vmatpush1.bf16.msra.mxu0 0
        %407 = vmatprep.subr.bf16.mxu0 0
        %408 = vmatpush1.bf16.msra.mxu0 0
        %409 = vmatprep.subr.bf16.mxu0 0
        %410 = vmatpush1.bf16.msra.mxu0 0
        %411 = vmatprep.subr.bf16.mxu0 0
        %412 = vmatpush1.bf16.msra.mxu0 0
        %413 = vmatprep.subr.bf16.mxu0 0
        %414 = vmatpush1.bf16.msra.mxu0 0
        %415 = vmatprep.subr.bf16.mxu0 0
        %416 = vmatpush1.bf16.msra.mxu0 0
        %417 = vmatprep.subr.bf16.mxu0 0
        %418 = vmatpush1.bf16.msra.mxu0 0
        %419 = vmatprep.subr.bf16.mxu0 0
        %420 = vmatpush1.bf16.msra.mxu0 0
        %421 = vmatprep.subr.bf16.mxu0 0
        %422 = vmatpush1.bf16.msra.mxu0 0
        %423 = vmatprep.subr.bf16.mxu0 0
        %424 = vmatpush1.bf16.msra.mxu0 0
        %425 = vmatprep.subr.bf16.mxu0 0
        %426 = vmatpush1.bf16.msra.mxu0 0
        %427 = vmatprep.subr.bf16.mxu0 0
        %428 = vmatpush1.bf16.msra.mxu0 0
        %429 = vmatprep.mubr.bf16.mxu0 0
        %430 = vmatmul.mubr.bf16.gmra.mrb[0].mxu0 %v389
        %v431 = vpop.f32.mrb[0].mxu0
        %v432 = vadd.f32 %v373, %v431
        %v433 = vpop.f32.mrb[0].mxu0
        %v434 = vadd.f32 %v375, %v433
        %v435 = vpop.f32.mrb[0].mxu0
        %v436 = vpop.f32.mrb[0].mxu0
        %437 = vdwg.mxu0
        %s438 = scalar_lea.vmem %s262, 12
        %v439 = vld [vmem:[%s438] sm:$0x3]
        %v440 = vld [vmem:[%s258] sm:$0x3f]
        %v442 = vcombine.high %v440, %v440
        %v444 = vunpack.c.l.s4 1983009808
        %v445 = vunpack.c.0.s8 %v444
        %v446 = vlaneseq
        %v447 = vshrl.u32 %v446, 7
        %v448 = vsub.s32 %v445, %v447
        %v449 = vrot.slane %v440, %v448
        %v451 = vunpack.c.l.s4 1983009808
        %v452 = vunpack.c.0.s8 %v451
        %v453 = vlaneseq
        %v454 = vshrl.u32 %v453, 7
        %v455 = vsub.s32 %v452, %v454
        %v456 = vrot.slane %v442, %v455
        %v457 = vcombine.high %v449, %v449
        %458 = vrot.lane.b32.xlu0 %v449, 96
        %v459 = vpop.permute.xlu0 %458
        %460 = vrot.lane.b32.xlu0 %v457, 96
        %v461 = vpop.permute.xlu0 %460
        %462 = vrot.lane.b32.xlu0 %v456, 96
        %v463 = vpop.permute.xlu0 %462
        %vm464 = vcmask 785408
        %v465 = vsel %vm464, %v459, %v461
        %v466 = vsel %vm464, %v461, %v463
        %v468 = vsel %vm327, %v439, 0
        %v471 = vsel %vm331, %v465, 0
        %v474 = vsel %vm331, %v466, 0
        %476 = vmatprep.subr.bf16.mxu0 %v474
        %477 = vmatpush1.bf16.msra.mxu0 %v471
        %478 = vmatprep.subr.bf16.mxu0 0
        %479 = vmatpush1.bf16.msra.mxu0 0
        %480 = vmatprep.subr.bf16.mxu0 0
        %481 = vmatpush1.bf16.msra.mxu0 0
        %482 = vmatprep.subr.bf16.mxu0 0
        %483 = vmatpush1.bf16.msra.mxu0 0
        %484 = vmatprep.subr.bf16.mxu0 0
        %485 = vmatpush1.bf16.msra.mxu0 0
        %486 = vmatprep.subr.bf16.mxu0 0
        %487 = vmatpush1.bf16.msra.mxu0 0
        %488 = vmatprep.subr.bf16.mxu0 0
        %489 = vmatpush1.bf16.msra.mxu0 0
        %490 = vmatprep.subr.bf16.mxu0 0
        %491 = vmatpush1.bf16.msra.mxu0 0
        %492 = vmatprep.subr.bf16.mxu0 0
        %493 = vmatpush1.bf16.msra.mxu0 0
        %494 = vmatprep.subr.bf16.mxu0 0
        %495 = vmatpush1.bf16.msra.mxu0 0
        %496 = vmatprep.subr.bf16.mxu0 0
        %497 = vmatpush1.bf16.msra.mxu0 0
        %498 = vmatprep.subr.bf16.mxu0 0
        %499 = vmatpush1.bf16.msra.mxu0 0
        %500 = vmatprep.subr.bf16.mxu0 0
        %501 = vmatpush1.bf16.msra.mxu0 0
        %502 = vmatprep.subr.bf16.mxu0 0
        %503 = vmatpush1.bf16.msra.mxu0 0
        %504 = vmatprep.subr.bf16.mxu0 0
        %505 = vmatpush1.bf16.msra.mxu0 0
        %506 = vmatprep.subr.bf16.mxu0 0
        %507 = vmatpush1.bf16.msra.mxu0 0
        %508 = vmatprep.mubr.bf16.mxu0 0
        %509 = vmatmul.mubr.bf16.gmra.mrb[0].mxu0 %v468
        %v510 = vpop.f32.mrb[0].mxu0
        %v511 = vadd.f32 0.0, %v510
        %v512 = vpop.f32.mrb[0].mxu0
        %v513 = vadd.f32 0.0, %v512
        %v514 = vpop.f32.mrb[0].mxu0
        %v515 = vpop.f32.mrb[0].mxu0
        %516 = vdwg.mxu0
        %v517 = vadd.f32 %v432, %v511
        %v518 = vadd.f32 %v434, %v513
        %vm519 = vcmp.ge.s32.totalorder %v294, 1
        %vm520 = vcmp.ge.s32.totalorder %v295, 1
        %v521 = vsel %vm519, 1, 0
        %v522 = vsel %vm520, 1, 0
        %vm523 = vcmp.eq.s32.totalorder %v521, 1
        %vm524 = vcmp.eq.s32.totalorder %v522, 1
        %v525 = vsel %vm523, %v517, 0.0
        %v526 = vsel %vm524, %v518, 0.0
        %v527 = vadd.f32 %v525, 0.0
        %v528 = vadd.f32 %v526, 0.0
        %s529 = scalar_lea.vmem %s262, 2
        %v530 = vld [vmem:[%s529] sm:$0x3]
        %v531 = vld [vmem:[%s258] sm:$0x3f]
        %s532 = scalar_lea.vmem %s262, 8
        %v533 = vld [vmem:[%s532] sm:$0x3]
        %v535 = vcombine.high %v531, %v531
        %v537 = vunpack.c.l.s4 1983009808
        %v538 = vunpack.c.0.s8 %v537
        %v539 = vlaneseq
        %v540 = vshrl.u32 %v539, 7
        %v541 = vsub.s32 %v538, %v540
        %v542 = vrot.slane %v531, %v541
        %v544 = vunpack.c.l.s4 1983009808
        %v545 = vunpack.c.0.s8 %v544
        %v546 = vlaneseq
        %v547 = vshrl.u32 %v546, 7
        %v548 = vsub.s32 %v545, %v547
        %v549 = vrot.slane %v535, %v548
        %v550 = vcombine.high %v542, %v542
        %551 = vrot.lane.b32.xlu0 %v542, 111
        %v552 = vpop.permute.xlu0 %551
        %553 = vrot.lane.b32.xlu0 %v550, 111
        %v554 = vpop.permute.xlu0 %553
        %555 = vrot.lane.b32.xlu0 %v549, 111
        %v556 = vpop.permute.xlu0 %555
        %vm557 = vcmask 908288
        %v558 = vsel %vm557, %v552, %v554
        %v559 = vsel %vm557, %v554, %v556
        %v561 = vsel %vm327, %v533, 0
        %v564 = vsel %vm331, %v558, 0
        %v567 = vsel %vm331, %v559, 0
        %569 = vmatprep.subr.bf16.mxu0 %v567
        %570 = vmatpush1.bf16.msra.mxu0 %v564
        %571 = vmatprep.subr.bf16.mxu0 0
        %572 = vmatpush1.bf16.msra.mxu0 0
        %573 = vmatprep.subr.bf16.mxu0 0
        %574 = vmatpush1.bf16.msra.mxu0 0
        %575 = vmatprep.subr.bf16.mxu0 0
        %576 = vmatpush1.bf16.msra.mxu0 0
        %577 = vmatprep.subr.bf16.mxu0 0
        %578 = vmatpush1.bf16.msra.mxu0 0
        %579 = vmatprep.subr.bf16.mxu0 0
        %580 = vmatpush1.bf16.msra.mxu0 0
        %581 = vmatprep.subr.bf16.mxu0 0
        %582 = vmatpush1.bf16.msra.mxu0 0
        %583 = vmatprep.subr.bf16.mxu0 0
        %584 = vmatpush1.bf16.msra.mxu0 0
        %585 = vmatprep.subr.bf16.mxu0 0
        %586 = vmatpush1.bf16.msra.mxu0 0
        %587 = vmatprep.subr.bf16.mxu0 0
        %588 = vmatpush1.bf16.msra.mxu0 0
        %589 = vmatprep.subr.bf16.mxu0 0
        %590 = vmatpush1.bf16.msra.mxu0 0
        %591 = vmatprep.subr.bf16.mxu0 0
        %592 = vmatpush1.bf16.msra.mxu0 0
        %593 = vmatprep.subr.bf16.mxu0 0
        %594 = vmatpush1.bf16.msra.mxu0 0
        %595 = vmatprep.subr.bf16.mxu0 0
        %596 = vmatpush1.bf16.msra.mxu0 0
        %597 = vmatprep.subr.bf16.mxu0 0
        %598 = vmatpush1.bf16.msra.mxu0 0
        %599 = vmatprep.subr.bf16.mxu0 0
        %600 = vmatpush1.bf16.msra.mxu0 0
        %601 = vmatprep.mubr.bf16.mxu0 0
        %602 = vmatmul.mubr.bf16.gmra.mrb[0].mxu0 %v561
        %v603 = vpop.f32.mrb[0].mxu0
        %v604 = vadd.f32 0.0, %v603
        %v605 = vpop.f32.mrb[0].mxu0
        %v606 = vadd.f32 0.0, %v605
        %v607 = vpop.f32.mrb[0].mxu0
        %v608 = vpop.f32.mrb[0].mxu0
        %609 = vdwg.mxu0
        %610 = vrot.lane.b32.xlu0 %v542, 127
        %v611 = vpop.permute.xlu0 %610
        %612 = vrot.lane.b32.xlu0 %v550, 127
        %v613 = vpop.permute.xlu0 %612
        %614 = vrot.lane.b32.xlu0 %v549, 127
        %v615 = vpop.permute.xlu0 %614
        %vm616 = vcmask 1039360
        %v617 = vsel %vm616, %v611, %v613
        %v618 = vsel %vm616, %v613, %v615
        %v620 = vsel %vm327, %v530, 0
        %v623 = vsel %vm331, %v617, 0
        %v626 = vsel %vm331, %v618, 0
        %628 = vmatprep.subr.bf16.mxu0 %v626
        %629 = vmatpush1.bf16.msra.mxu0 %v623
        %630 = vmatprep.subr.bf16.mxu0 0
        %631 = vmatpush1.bf16.msra.mxu0 0
        %632 = vmatprep.subr.bf16.mxu0 0
        %633 = vmatpush1.bf16.msra.mxu0 0
        %634 = vmatprep.subr.bf16.mxu0 0
        %635 = vmatpush1.bf16.msra.mxu0 0
        %636 = vmatprep.subr.bf16.mxu0 0
        %637 = vmatpush1.bf16.msra.mxu0 0
        %638 = vmatprep.subr.bf16.mxu0 0
        %639 = vmatpush1.bf16.msra.mxu0 0
        %640 = vmatprep.subr.bf16.mxu0 0
        %641 = vmatpush1.bf16.msra.mxu0 0
        %642 = vmatprep.subr.bf16.mxu0 0
        %643 = vmatpush1.bf16.msra.mxu0 0
        %644 = vmatprep.subr.bf16.mxu0 0
        %645 = vmatpush1.bf16.msra.mxu0 0
        %646 = vmatprep.subr.bf16.mxu0 0
        %647 = vmatpush1.bf16.msra.mxu0 0
        %648 = vmatprep.subr.bf16.mxu0 0
        %649 = vmatpush1.bf16.msra.mxu0 0
        %650 = vmatprep.subr.bf16.mxu0 0
        %651 = vmatpush1.bf16.msra.mxu0 0
        %652 = vmatprep.subr.bf16.mxu0 0
        %653 = vmatpush1.bf16.msra.mxu0 0
        %654 = vmatprep.subr.bf16.mxu0 0
        %655 = vmatpush1.bf16.msra.mxu0 0
        %656 = vmatprep.subr.bf16.mxu0 0
        %657 = vmatpush1.bf16.msra.mxu0 0
        %658 = vmatprep.subr.bf16.mxu0 0
        %659 = vmatpush1.bf16.msra.mxu0 0
        %660 = vmatprep.mubr.bf16.mxu0 0
        %661 = vmatmul.mubr.bf16.gmra.mrb[0].mxu0 %v620
        %v662 = vpop.f32.mrb[0].mxu0
        %v663 = vadd.f32 %v604, %v662
        %v664 = vpop.f32.mrb[0].mxu0
        %v665 = vadd.f32 %v606, %v664
        %v666 = vpop.f32.mrb[0].mxu0
        %v667 = vpop.f32.mrb[0].mxu0
        %668 = vdwg.mxu0
        %s669 = scalar_lea.vmem %s262, 14
        %v670 = vld [vmem:[%s669] sm:$0x3]
        %v671 = vld [vmem:[%s258] sm:$0x3f]
        %v673 = vcombine.high %v671, %v671
        %v675 = vunpack.c.l.s4 1983009808
        %v676 = vunpack.c.0.s8 %v675
        %v677 = vlaneseq
        %v678 = vshrl.u32 %v677, 7
        %v679 = vsub.s32 %v676, %v678
        %v680 = vrot.slane %v671, %v679
        %v682 = vunpack.c.l.s4 1983009808
        %v683 = vunpack.c.0.s8 %v682
        %v684 = vlaneseq
        %v685 = vshrl.u32 %v684, 7
        %v686 = vsub.s32 %v683, %v685
        %v687 = vrot.slane %v673, %v686
        %v688 = vcombine.high %v680, %v680
        %689 = vrot.lane.b32.xlu0 %v680, 95
        %v690 = vpop.permute.xlu0 %689
        %691 = vrot.lane.b32.xlu0 %v688, 95
        %v692 = vpop.permute.xlu0 %691
        %693 = vrot.lane.b32.xlu0 %v687, 95
        %v694 = vpop.permute.xlu0 %693
        %vm695 = vcmask 777216
        %v696 = vsel %vm695, %v690, %v692
        %v697 = vsel %vm695, %v692, %v694
        %v699 = vsel %vm327, %v670, 0
        %v702 = vsel %vm331, %v696, 0
        %v705 = vsel %vm331, %v697, 0
        %707 = vmatprep.subr.bf16.mxu0 %v705
        %708 = vmatpush1.bf16.msra.mxu0 %v702
        %709 = vmatprep.subr.bf16.mxu0 0
        %710 = vmatpush1.bf16.msra.mxu0 0
        %711 = vmatprep.subr.bf16.mxu0 0
        %712 = vmatpush1.bf16.msra.mxu0 0
        %713 = vmatprep.subr.bf16.mxu0 0
        %714 = vmatpush1.bf16.msra.mxu0 0
        %715 = vmatprep.subr.bf16.mxu0 0
        %716 = vmatpush1.bf16.msra.mxu0 0
        %717 = vmatprep.subr.bf16.mxu0 0
        %718 = vmatpush1.bf16.msra.mxu0 0
        %719 = vmatprep.subr.bf16.mxu0 0
        %720 = vmatpush1.bf16.msra.mxu0 0
        %721 = vmatprep.subr.bf16.mxu0 0
        %722 = vmatpush1.bf16.msra.mxu0 0
        %723 = vmatprep.subr.bf16.mxu0 0
        %724 = vmatpush1.bf16.msra.mxu0 0
        %725 = vmatprep.subr.bf16.mxu0 0
        %726 = vmatpush1.bf16.msra.mxu0 0
        %727 = vmatprep.subr.bf16.mxu0 0
        %728 = vmatpush1.bf16.msra.mxu0 0
        %729 = vmatprep.subr.bf16.mxu0 0
        %730 = vmatpush1.bf16.msra.mxu0 0
        %731 = vmatprep.subr.bf16.mxu0 0
        %732 = vmatpush1.bf16.msra.mxu0 0
        %733 = vmatprep.subr.bf16.mxu0 0
        %734 = vmatpush1.bf16.msra.mxu0 0
        %735 = vmatprep.subr.bf16.mxu0 0
        %736 = vmatpush1.bf16.msra.mxu0 0
        %737 = vmatprep.subr.bf16.mxu0 0
        %738 = vmatpush1.bf16.msra.mxu0 0
        %739 = vmatprep.mubr.bf16.mxu0 0
        %740 = vmatmul.mubr.bf16.gmra.mrb[0].mxu0 %v699
        %v741 = vpop.f32.mrb[0].mxu0
        %v742 = vadd.f32 0.0, %v741
        %v743 = vpop.f32.mrb[0].mxu0
        %v744 = vadd.f32 0.0, %v743
        %v745 = vpop.f32.mrb[0].mxu0
        %v746 = vpop.f32.mrb[0].mxu0
        %747 = vdwg.mxu0
        %v748 = vadd.f32 %v663, %v742
        %v749 = vadd.f32 %v665, %v744
        %v750 = vadd.f32 %v527, %v748
        %v751 = vadd.f32 %v528, %v749
        %s752 = scalar_lea.vmem %s262, 4
        %v753 = vld [vmem:[%s752] sm:$0x3]
        %v754 = vld [vmem:[%s258] sm:$0x3f]
        %s755 = scalar_lea.vmem %s262, 10
        %v756 = vld [vmem:[%s755] sm:$0x3]
        %v758 = vcombine.high %v754, %v754
        %v760 = vunpack.c.l.s4 1983009808
        %v761 = vunpack.c.0.s8 %v760
        %v762 = vlaneseq
        %v763 = vshrl.u32 %v762, 7
        %v764 = vsub.s32 %v761, %v763
        %v765 = vrot.slane %v754, %v764
        %v767 = vunpack.c.l.s4 1983009808
        %v768 = vunpack.c.0.s8 %v767
        %v769 = vlaneseq
        %v770 = vshrl.u32 %v769, 7
        %v771 = vsub.s32 %v768, %v770
        %v772 = vrot.slane %v758, %v771
        %v773 = vcombine.high %v765, %v765
        %774 = vrot.lane.b32.xlu0 %v765, 110
        %v775 = vpop.permute.xlu0 %774
        %776 = vrot.lane.b32.xlu0 %v773, 110
        %v777 = vpop.permute.xlu0 %776
        %778 = vrot.lane.b32.xlu0 %v772, 110
        %v779 = vpop.permute.xlu0 %778
        %vm780 = vcmask 900096
        %v781 = vsel %vm780, %v775, %v777
        %v782 = vsel %vm780, %v777, %v779
        %v784 = vsel %vm327, %v756, 0
        %v787 = vsel %vm331, %v781, 0
        %v790 = vsel %vm331, %v782, 0
        %792 = vmatprep.subr.bf16.mxu0 %v790
        %793 = vmatpush1.bf16.msra.mxu0 %v787
        %794 = vmatprep.subr.bf16.mxu0 0
        %795 = vmatpush1.bf16.msra.mxu0 0
        %796 = vmatprep.subr.bf16.mxu0 0
        %797 = vmatpush1.bf16.msra.mxu0 0
        %798 = vmatprep.subr.bf16.mxu0 0
        %799 = vmatpush1.bf16.msra.mxu0 0
        %800 = vmatprep.subr.bf16.mxu0 0
        %801 = vmatpush1.bf16.msra.mxu0 0
        %802 = vmatprep.subr.bf16.mxu0 0
        %803 = vmatpush1.bf16.msra.mxu0 0
        %804 = vmatprep.subr.bf16.mxu0 0
        %805 = vmatpush1.bf16.msra.mxu0 0
        %806 = vmatprep.subr.bf16.mxu0 0
        %807 = vmatpush1.bf16.msra.mxu0 0
        %808 = vmatprep.subr.bf16.mxu0 0
        %809 = vmatpush1.bf16.msra.mxu0 0
        %810 = vmatprep.subr.bf16.mxu0 0
        %811 = vmatpush1.bf16.msra.mxu0 0
        %812 = vmatprep.subr.bf16.mxu0 0
        %813 = vmatpush1.bf16.msra.mxu0 0
        %814 = vmatprep.subr.bf16.mxu0 0
        %815 = vmatpush1.bf16.msra.mxu0 0
        %816 = vmatprep.subr.bf16.mxu0 0
        %817 = vmatpush1.bf16.msra.mxu0 0
        %818 = vmatprep.subr.bf16.mxu0 0
        %819 = vmatpush1.bf16.msra.mxu0 0
        %820 = vmatprep.subr.bf16.mxu0 0
        %821 = vmatpush1.bf16.msra.mxu0 0
        %822 = vmatprep.subr.bf16.mxu0 0
        %823 = vmatpush1.bf16.msra.mxu0 0
        %824 = vmatprep.mubr.bf16.mxu0 0
        %825 = vmatmul.mubr.bf16.gmra.mrb[0].mxu0 %v784
        %v826 = vpop.f32.mrb[0].mxu0
        %v827 = vadd.f32 0.0, %v826
        %v828 = vpop.f32.mrb[0].mxu0
        %v829 = vadd.f32 0.0, %v828
        %v830 = vpop.f32.mrb[0].mxu0
        %v831 = vpop.f32.mrb[0].mxu0
        %832 = vdwg.mxu0
        %833 = vrot.lane.b32.xlu0 %v765, 126
        %v834 = vpop.permute.xlu0 %833
        %835 = vrot.lane.b32.xlu0 %v773, 126
        %v836 = vpop.permute.xlu0 %835
        %837 = vrot.lane.b32.xlu0 %v772, 126
        %v838 = vpop.permute.xlu0 %837
        %vm839 = vcmask 1031168
        %v840 = vsel %vm839, %v834, %v836
        %v841 = vsel %vm839, %v836, %v838
        %v843 = vsel %vm327, %v753, 0
        %v846 = vsel %vm331, %v840, 0
        %v849 = vsel %vm331, %v841, 0
        %851 = vmatprep.subr.bf16.mxu0 %v849
        %852 = vmatpush1.bf16.msra.mxu0 %v846
        %853 = vmatprep.subr.bf16.mxu0 0
        %854 = vmatpush1.bf16.msra.mxu0 0
        %855 = vmatprep.subr.bf16.mxu0 0
        %856 = vmatpush1.bf16.msra.mxu0 0
        %857 = vmatprep.subr.bf16.mxu0 0
        %858 = vmatpush1.bf16.msra.mxu0 0
        %859 = vmatprep.subr.bf16.mxu0 0
        %860 = vmatpush1.bf16.msra.mxu0 0
        %861 = vmatprep.subr.bf16.mxu0 0
        %862 = vmatpush1.bf16.msra.mxu0 0
        %863 = vmatprep.subr.bf16.mxu0 0
        %864 = vmatpush1.bf16.msra.mxu0 0
        %865 = vmatprep.subr.bf16.mxu0 0
        %866 = vmatpush1.bf16.msra.mxu0 0
        %867 = vmatprep.subr.bf16.mxu0 0
        %868 = vmatpush1.bf16.msra.mxu0 0
        %869 = vmatprep.subr.bf16.mxu0 0
        %870 = vmatpush1.bf16.msra.mxu0 0
        %871 = vmatprep.subr.bf16.mxu0 0
        %872 = vmatpush1.bf16.msra.mxu0 0
        %873 = vmatprep.subr.bf16.mxu0 0
        %874 = vmatpush1.bf16.msra.mxu0 0
        %875 = vmatprep.subr.bf16.mxu0 0
        %876 = vmatpush1.bf16.msra.mxu0 0
        %877 = vmatprep.subr.bf16.mxu0 0
        %878 = vmatpush1.bf16.msra.mxu0 0
        %879 = vmatprep.subr.bf16.mxu0 0
        %880 = vmatpush1.bf16.msra.mxu0 0
        %881 = vmatprep.subr.bf16.mxu0 0
        %882 = vmatpush1.bf16.msra.mxu0 0
        %883 = vmatprep.mubr.bf16.mxu0 0
        %884 = vmatmul.mubr.bf16.gmra.mrb[0].mxu0 %v843
        %v885 = vpop.f32.mrb[0].mxu0
        %v886 = vadd.f32 %v827, %v885
        %v887 = vpop.f32.mrb[0].mxu0
        %v888 = vadd.f32 %v829, %v887
        %v889 = vpop.f32.mrb[0].mxu0
        %v890 = vpop.f32.mrb[0].mxu0
        %891 = vdwg.mxu0
        %s892 = scalar_lea.vmem %s262, 16
        %v893 = vld [vmem:[%s892] sm:$0x3]
        %v894 = vld [vmem:[%s258] sm:$0x3f]
        %v896 = vcombine.high %v894, %v894
        %v898 = vunpack.c.l.s4 1983009808
        %v899 = vunpack.c.0.s8 %v898
        %v900 = vlaneseq
        %v901 = vshrl.u32 %v900, 7
        %v902 = vsub.s32 %v899, %v901
        %v903 = vrot.slane %v894, %v902
        %v905 = vunpack.c.l.s4 1983009808
        %v906 = vunpack.c.0.s8 %v905
        %v907 = vlaneseq
        %v908 = vshrl.u32 %v907, 7
        %v909 = vsub.s32 %v906, %v908
        %v910 = vrot.slane %v896, %v909
        %v911 = vcombine.high %v903, %v903
        %912 = vrot.lane.b32.xlu0 %v903, 94
        %v913 = vpop.permute.xlu0 %912
        %914 = vrot.lane.b32.xlu0 %v911, 94
        %v915 = vpop.permute.xlu0 %914
        %916 = vrot.lane.b32.xlu0 %v910, 94
        %v917 = vpop.permute.xlu0 %916
        %vm918 = vcmask 769024
        %v919 = vsel %vm918, %v913, %v915
        %v920 = vsel %vm918, %v915, %v917
        %v922 = vsel %vm327, %v893, 0
        %v925 = vsel %vm331, %v919, 0
        %v928 = vsel %vm331, %v920, 0
        %930 = vmatprep.subr.bf16.mxu0 %v928
        %931 = vmatpush1.bf16.msra.mxu0 %v925
        %932 = vmatprep.subr.bf16.mxu0 0
        %933 = vmatpush1.bf16.msra.mxu0 0
        %934 = vmatprep.subr.bf16.mxu0 0
        %935 = vmatpush1.bf16.msra.mxu0 0
        %936 = vmatprep.subr.bf16.mxu0 0
        %937 = vmatpush1.bf16.msra.mxu0 0
        %938 = vmatprep.subr.bf16.mxu0 0
        %939 = vmatpush1.bf16.msra.mxu0 0
        %940 = vmatprep.subr.bf16.mxu0 0
        %941 = vmatpush1.bf16.msra.mxu0 0
        %942 = vmatprep.subr.bf16.mxu0 0
        %943 = vmatpush1.bf16.msra.mxu0 0
        %944 = vmatprep.subr.bf16.mxu0 0
        %945 = vmatpush1.bf16.msra.mxu0 0
        %946 = vmatprep.subr.bf16.mxu0 0
        %947 = vmatpush1.bf16.msra.mxu0 0
        %948 = vmatprep.subr.bf16.mxu0 0
        %949 = vmatpush1.bf16.msra.mxu0 0
        %950 = vmatprep.subr.bf16.mxu0 0
        %951 = vmatpush1.bf16.msra.mxu0 0
        %952 = vmatprep.subr.bf16.mxu0 0
        %953 = vmatpush1.bf16.msra.mxu0 0
        %954 = vmatprep.subr.bf16.mxu0 0
        %955 = vmatpush1.bf16.msra.mxu0 0
        %956 = vmatprep.subr.bf16.mxu0 0
        %957 = vmatpush1.bf16.msra.mxu0 0
        %958 = vmatprep.subr.bf16.mxu0 0
        %959 = vmatpush1.bf16.msra.mxu0 0
        %960 = vmatprep.subr.bf16.mxu0 0
        %961 = vmatpush1.bf16.msra.mxu0 0
        %962 = vmatprep.mubr.bf16.mxu0 0
        %963 = vmatmul.mubr.bf16.gmra.mrb[0].mxu0 %v922
        %v964 = vpop.f32.mrb[0].mxu0
        %v965 = vadd.f32 0.0, %v964
        %v966 = vpop.f32.mrb[0].mxu0
        %v967 = vadd.f32 0.0, %v966
        %v968 = vpop.f32.mrb[0].mxu0
        %v969 = vpop.f32.mrb[0].mxu0
        %970 = vdwg.mxu0
        %v971 = vadd.f32 %v886, %v965
        %v972 = vadd.f32 %v888, %v967
        %vm973 = vcmp.lt.s32.totalorder %v294, 15
        %vm974 = vcmp.lt.s32.totalorder %v295, 15
        %v975 = vsel %vm973, 1, 0
        %v976 = vsel %vm974, 1, 0
        %vm977 = vcmp.eq.s32.totalorder %v975, 1
        %vm978 = vcmp.eq.s32.totalorder %v976, 1
        %v979 = vsel %vm977, %v971, 0.0
        %v980 = vsel %vm978, %v972, 0.0
        %v981 = vadd.f32 %v750, %v979
        %v982 = vadd.f32 %v751, %v980
        %v983 = vld [vmem:[%s266] sm:$0xf]
        %985 = vset.pattern.permute.xlu0 0
        %986 = vperm.xlu0 %985, %v983
        %v987 = vpop.permute.xlu0 %986
        %v989 = vadd.f32 %v981, %v987
        %v990 = vadd.f32 %v982, %v987
        %v991 = vadd.f32 %v989, 3.0
        %v992 = vadd.f32 %v990, 3.0
        %v993 = vmax.f32 %v991, 0.0
        %v994 = vmax.f32 %v992, 0.0
        %v995 = vmin.f32 %v993, 6.0
        %v996 = vmin.f32 %v994, 6.0
        %v997 = vmul.f32 %v989, %v995
        %v998 = vmul.f32 %v990, %v996
        %s999 = sld [smem:[#allocation2]]
        %v1000 = vstv %s999
        %v1001 = vmul.f32 %v1000, %v997
        %v1002 = vmul.f32 %v1000, %v998
        %s1003 = sld [smem:[#allocation2 + $0x1]]
        %v1004 = vstv %s1003
        %v1005 = vadd.f32 %v1001, %v1004
        %v1006 = vadd.f32 %v1002, %v1004
        %v1009 = vcombine.low %v1005, %v1006
        %1011 = vst [vmem:[%s253] sm:$0xff] %v1009
        %s1012 = sand.u32 %s149, 1
        %s1013 = scalar_lea.sflag [#allocation3], %s1012
        %s1014 = sand.u32 %s149, 1
        %s1015 = smul.addr %s1014, 8
        %s1016 = scalar_lea.vmem [#allocation5], %s1015
        // Predicated region
        $region41: #{tpu_custom_call.1} parent=35 // pred_check
          %p1017 = pneg %p159
        $region42: #{tpu_custom_call.1} parent=35 // pred_check_branch
          %1019 = sbr.rel (%p1017) target = $region44
        $region43: #{tpu_custom_call.1} parent=35 // pred_region
          %s1020 = smul.u32 2, %s26
          %s1022 = ssub.s32 128, 128
          %1023 = vsyncadd %s1013, %s1022
          %s1024 = smul.addr %s25, 2
          %s1025 = sadd.s32 %s1020, %s1024
          %s1026 = smul.addr %s24, 2
          %s1027 = sadd.s32 %s1025, %s1026
          %s1028 = smul.addr %s1027, 64
          %s1029 = scalar_lea.hbm %s4, %s1028
          %s1031 = sshll.u32 %s1016, 4
          %s1032 = int_to_ptr.vmem [resolvable:$true] %s1031
          %1034 = dma.vmem_to_hbm [thread:$0]  %s1032, 128, %s1029, %s1013
        $region44: #{tpu_custom_call.1} parent=35 // pred_fallthru
          _
      $region36: #{tpu_custom_call.1} parent=5 // pred_fallthru
        _
      %p1035 = scmp.le.s32.totalorder 2, %s14
      // Predicated region
      $region45: #{tpu_custom_call.1} parent=5 // pred_check
        %p1036 = pneg %p1035
      $region46: #{tpu_custom_call.1} parent=5 // pred_check_branch
        %1038 = sbr.rel (%p1036) target = $region48
      $region47: #{tpu_custom_call.1} parent=5 // pred_region
        %s1039 = ssub.s32 %s14, 2
        // Predicated region
        $region49: #{tpu_custom_call.1} parent=47 // pred_check
          %p1040 = pneg %p165
        $region50: #{tpu_custom_call.1} parent=47 // pred_check_branch
          %1042 = sbr.rel (%p1040) target = $region52
        $region51: #{tpu_custom_call.1} parent=47 // pred_region
          %s1043 = sand.u32 %s150, 1
          %s1044 = scalar_lea.sflag [#allocation3], %s1043
          %s1045 = sand.u32 %s150, 1
          %s1046 = smul.addr %s1045, 8
          %s1047 = scalar_lea.vmem [#allocation5], %s1046
          %1048 = dma.done %s1044, 128
        $region52: #{tpu_custom_call.1} parent=47 // pred_fallthru
          _
      $region48: #{tpu_custom_call.1} parent=5 // pred_fallthru
        _
    $region6: #{tpu_custom_call.1} parent=1 // loop_footer
      %s18 = sadd.s32 1, %s14
    $region7: #{tpu_custom_call.1} parent=1 // loop_footer_branch
      %13 = sbr.rel target = $region3
    $region8: #{tpu_custom_call.1} parent=1 // loop_exit
      _
    %1049 = vsyncpa [#allocation3], 1
    %s1050 = scalar_lea.sflag [#allocation3], 1
    %1051 = vsyncpa %s1050, 1
    %1052 = vsyncpa [#allocation4], 1
    %s1053 = scalar_lea.sflag [#allocation4], 1
    %1054 = vsyncpa %s1053, 1

</llo_original>
